<compile_context>
chip_gen: v7x
topology: tpu7x:2x2x1
jax: 0.10.0
libtpu: 0.0.40
codegen_flags: <defaults>
</compile_context>

<pallas_src>
import functools

import jax
import jax.numpy as jnp
from jax.experimental import pallas as pl
from jax.experimental.pallas import tpu as pltpu


_MIN_PALLAS_ELEMENTS = 256 * 1024  # below this, XLA's fused slice+FMA wins


def _map_kernel(x_ref, mean_ref, var_ref, *, m, b):
    """x_ref: [tile_r, 2N]; mean_ref / var_ref: [tile_r, N] (all VMEM).

    Slices the input ref directly; with N % 128 == 0 both slices are
    lane-tile aligned, so this lowers to dense copies + one VPU FMA.
    """
    n = mean_ref.shape[-1]
    mean_ref[...] = x_ref[:, :n]
    xv = x_ref[:, n:]
    var_ref[...] = (xv.astype(jnp.float32) * m + b).astype(var_ref.dtype)


def _device_generation():
    try:
        kind = jax.devices()[0].device_kind.lower()
    except Exception:  # defensive: never let detection break the kernel
        return "unknown"
    if "v5 lite" in kind or "v5e" in kind or "v5litepod" in kind:
        return "v5e"
    if "v6" in kind:
        return "v6e"
    if "v7" in kind:
        return "v7x"
    return "unknown"


def _window_budget_and_cap(gen):
    """Total double-buffered VMEM window budget (bytes) and max rows per tile."""
    if gen == "v7x":
        return 16 * 1024 * 1024, 4096   # 64 MiB VMEM, 32 MiB scoped default
    if gen == "v6e":
        return 16 * 1024 * 1024, 2048   # 128 MiB VMEM, 32 MiB scoped default
    # v5e (16 MiB scoped-VMEM default) and unknown chips: stay conservative.
    return 8 * 1024 * 1024, 1024


def _pick_tile_rows(rows, feat, itemsize, gen):
    budget, cap = _window_budget_and_cap(gen)
    sub = max(8, 32 // itemsize)            # sublane granularity for this dtype
    per_row = 4 * feat * itemsize           # 2 buffers x (input 2N + outputs N+N)
    tile = budget // max(per_row, 1)
    tile = max(sub, (tile // sub) * sub)
    tile = min(tile, cap)
    if rows <= tile:
        return rows                          # single full-extent block (always legal)
    return tile


def map_continuous_to_action(x, range_min=0.1, range_max=1.0):
    """JAX/Pallas equivalent of MapContinuousToAction.forward.

    x: array [..., 2*N] -> (mean [..., N], var [..., N])
    """
    m = (range_max - range_min) / 2.0        # tanh range is [-1, 1]
    b = range_min + m

    *lead, feat = x.shape
    assert feat % 2 == 0, "last dim must be even (2*N values for N actions)"
    n = feat // 2

    # XLA fallback: small arrays (custom-call overhead dominates) or
    # lane-unaligned N (output last dim not a multiple of 128 -> masked stores).
    if x.size < _MIN_PALLAS_ELEMENTS or n % 128 != 0:
        xv = x[..., n:]
        var = (xv.astype(jnp.float32) * m + b).astype(x.dtype)
        return x[..., :n], var

    rows = x.size // feat
    x2d = x.reshape(rows, feat)

    gen = _device_generation()
    tile_r = _pick_tile_rows(rows, feat, x.dtype.itemsize, gen)
    grid_steps = pl.cdiv(rows, tile_r)

    # v7x has 2 TensorCores: shard row tiles across them when the grid is deep
    # and even enough that each core still double-buffers.  Harmless single-TC
    # PARALLEL everywhere else.
    semantics = pltpu.PARALLEL
    if (gen == "v7x" and grid_steps >= 8 and grid_steps % 2 == 0
            and rows % tile_r == 0):
        semantics = pltpu.CORE_PARALLEL

    kernel = functools.partial(_map_kernel, m=m, b=b)
    mean2d, var2d = pl.pallas_call(
        kernel,
        out_shape=(
            jax.ShapeDtypeStruct((rows, n), x.dtype),
            jax.ShapeDtypeStruct((rows, n), x.dtype),
        ),
        grid=(grid_steps,),
        in_specs=[pl.BlockSpec((tile_r, feat), lambda i: (i, 0))],
        out_specs=(
            pl.BlockSpec((tile_r, n), lambda i: (i, 0)),
            pl.BlockSpec((tile_r, n), lambda i: (i, 0)),
        ),
        compiler_params=pltpu.CompilerParams(dimension_semantics=(semantics,)),
    )(x2d)

    return mean2d.reshape(*lead, n), var2d.reshape(*lead, n)


if __name__ == "__main__":
    # Pallas path: batch=16, seq=512, N=128 continuous actions -> last dim 256.
    # rows = 8192 -> multi-step, double-buffered row grid; N % 128 == 0 so the
    # in-kernel split is lane-aligned.
    batch, seq, num_actions = 16, 512, 128
    x = jax.random.uniform(
        jax.random.PRNGKey(0), (batch, seq, 2 * num_actions),
        dtype=jnp.float32, minval=-1.0, maxval=1.0)

    mean, var = map_continuous_to_action(x, range_min=0.1, range_max=1.0)
    jax.block_until_ready((mean, var))

    # Reference check against plain-JAX semantics (matches the PyTorch module).
    m_ref = (1.0 - 0.1) / 2.0
    b_ref = 0.1 + m_ref
    assert mean.shape == (batch, seq, num_actions)
    assert var.shape == (batch, seq, num_actions)
    assert jnp.allclose(mean, x[..., :num_actions], atol=1e-6)
    assert jnp.allclose(var, x[..., num_actions:] * m_ref + b_ref, atol=1e-6)

    # Small / lane-unaligned shape (N=16): exercises the plain-XLA fallback.
    x2 = jax.random.uniform(
        jax.random.PRNGKey(1), (2, 8, 32),
        dtype=jnp.float32, minval=-1.0, maxval=1.0)
    mean2, var2 = map_continuous_to_action(x2)
    jax.block_until_ready((mean2, var2))
    assert jnp.allclose(mean2, x2[..., :16], atol=1e-6)
    assert jnp.allclose(var2, x2[..., 16:] * m_ref + b_ref, atol=1e-6)

    print("KERNEL_OK")
</pallas_src>

<mosaic_0001>
module attributes {stable_mosaic.version = 11 : i64} {
  func.func @_map_kernel(%arg0: i32, %arg1: memref<1024x256xf32, #tpu.memory_space<vmem>>, %arg2: memref<1024x128xf32, #tpu.memory_space<vmem>>, %arg3: memref<1024x128xf32, #tpu.memory_space<vmem>>) attributes {dimension_semantics = [#tpu.dimension_semantics<parallel>], iteration_bounds = array<i64: 8>, scalar_prefetch = 0 : i64, scratch_operands = 0 : i64, tpu.core_type = #tpu.core_type<tc>, window_params = [{transform_indices = @transform_0, window_bounds = array<i64: 1024, 256>}, {transform_indices = @transform_1, window_bounds = array<i64: 1024, 128>}, {transform_indices = @transform_2, window_bounds = array<i64: 1024, 128>}]} {
    %c0 = arith.constant 0 : index
    %c0_0 = arith.constant 0 : index
    %0 = vector.load %arg1[%c0, %c0_0] : memref<1024x256xf32, #tpu.memory_space<vmem>>, vector<1024x128xf32>
    %c0_1 = arith.constant 0 : index
    %c0_2 = arith.constant 0 : index
    %1 = vector.load %arg2[%c0_1, %c0_2] : memref<1024x128xf32, #tpu.memory_space<vmem>>, vector<1024x128xf32>
    tpu.vector_store %arg2[%c0_1, %c0_2], %0 {strides = array<i32>} : memref<1024x128xf32, #tpu.memory_space<vmem>>, vector<1024x128xf32>,
    %c0_3 = arith.constant 0 : index
    %c128 = arith.constant 128 : index
    %2 = vector.load %arg1[%c0_3, %c128] : memref<1024x256xf32, #tpu.memory_space<vmem>>, vector<1024x128xf32>
    %cst = arith.constant 4.500000e-01 : f32
    %3 = vector.broadcast %cst : f32 to vector<1024x128xf32>
    %4 = arith.mulf %2, %3 : vector<1024x128xf32>
    %cst_4 = arith.constant 5.500000e-01 : f32
    %5 = vector.broadcast %cst_4 : f32 to vector<1024x128xf32>
    %6 = arith.addf %4, %5 : vector<1024x128xf32>
    %c0_5 = arith.constant 0 : index
    %c0_6 = arith.constant 0 : index
    %7 = vector.load %arg3[%c0_5, %c0_6] : memref<1024x128xf32, #tpu.memory_space<vmem>>, vector<1024x128xf32>
    tpu.vector_store %arg3[%c0_5, %c0_6], %6 {strides = array<i32>} : memref<1024x128xf32, #tpu.memory_space<vmem>>, vector<1024x128xf32>,
    return
  }
  func.func @transform_0(%arg0: i32) -> (i32, i32) {
    %c0_i32 = arith.constant 0 : i32
    %c0_i32_0 = arith.constant 0 : i32
    return %arg0, %c0_i32 : i32, i32
  }
  func.func @transform_1(%arg0: i32) -> (i32, i32) {
    %c0_i32 = arith.constant 0 : i32
    %c0_i32_0 = arith.constant 0 : i32
    return %arg0, %c0_i32 : i32, i32
  }
  func.func @transform_2(%arg0: i32) -> (i32, i32) {
    %c0_i32 = arith.constant 0 : i32
    %c0_i32_0 = arith.constant 0 : i32
    return %arg0, %c0_i32 : i32, i32
  }
}

</mosaic_0001>

<llo_original>
// kernel: tpu_custom_call.1
$region0: #{tpu_custom_call.1}
  #allocation0 [shape = 'u32[]', space=smem, size = 0x4, offset = 0x4, fixed_abs, tag = 'smem constant byte address 0x4 - core index']
  #allocation1 [shape = 'u32[144,128]{1,0:T(1,128)}', space=vmem, size = 0x12000, scoped, tag = 'internal scratch']
  %s0 = inlined_call_operand.hbm [shape: f32[8192,256], index: 0, kind: input, shape index: {}]
  %s1 = inlined_call_operand.hbm [shape: f32[8192,128], index: 1, kind: output, shape index: {0}]
  %s2 = inlined_call_operand.hbm [shape: f32[8192,128], index: 2, kind: output, shape index: {1}]
  %3 = xla_tuple %s1, %s2
  %s4 = sld [smem:[#allocation0]]
  $region49: #{tpu_custom_call.1} parent=0
    _
  %s6 = ssub.s32 1, %s4
  %s7 = scalar_select 0, %s6, %s4
  $region1: #{tpu_custom_call.1} parent=0
    #allocation2 [shape = 'u8[2097152]{0}', space=vmem, size = 0x200000, scoped, tag = 'input window, operand 0']
    #allocation3 [shape = 's32[2]{0}', space=sflag, size = 0x8, scoped, tag = 'scoped memory for tpu_custom_call.1']
    #allocation4 [shape = 's32[2]{0}', space=sflag, size = 0x8, scoped, tag = 'scoped memory for tpu_custom_call.1']
    #allocation5 [shape = 'u8[1048576]{0}', space=vmem, size = 0x100000, scoped, tag = 'output window, operand 0']
    #allocation6 [shape = 'u8[1048576]{0}', space=vmem, size = 0x100000, scoped, tag = 'output window, operand 1']
    #allocation7 [shape = 's32[2]{0}', space=sflag, size = 0x8, scoped, tag = 'scoped memory for tpu_custom_call.1']
    %8 = vsyncpa [#allocation3], 0
    %s9 = scalar_lea.sflag [#allocation3], 1
    %10 = vsyncpa %s9, 0
    %11 = vsyncpa [#allocation4], 0
    %s12 = scalar_lea.sflag [#allocation4], 1
    %13 = vsyncpa %s12, 0
    %14 = vsyncpa [#allocation7], 0
    %s15 = scalar_lea.sflag [#allocation7], 1
    %16 = vsyncpa %s15, 0
    loop: start=0, step=1, limit=10
    $region2: #{tpu_custom_call.1} parent=1 // loop_pre_header
      _
    $region3: #{tpu_custom_call.1} parent=1 // loop_header
      %s18 = sphi 0, %s22
      %p19 = scmp.ge.s32.totalorder %s18, 10
      %s28 = sphi 0, %s30
      %s31 = sphi 0, %s28
      %s32 = sphi 0, %s31
      %s48 = sphi 0, %s32
      %s54 = sphi 0, %s56
      %s57 = sphi 0, %s54
      %s58 = sphi 0, %s57
      %s74 = sphi 0, %s58
      %s80 = sphi 0, %s82
      %s83 = sphi 0, %s80
      %s84 = sphi 0, %s83
      %s100 = sphi 0, %s84
    $region4: #{tpu_custom_call.1} parent=1 // loop_header_branch
      %21 = sbr.rel (%p19) target = $region8
    $region5: #{tpu_custom_call.1} parent=1 // loop_body
      %s23 = ssub.s32 %s18, 1
      %s24 = ssub.s32 %s18, 2
      %s25 = sadd.s32 %s18, 1
      %s26 = ssub.s32 %s18, %s25
      %p27 = scmp.eq.s32.totalorder %s26, 0
      %s29 = sadd.s32 %s28, 1
      %s30 = scalar_select %p27, %s28, %s29
      %p33 = pneg %p27
      %p34 = scmp.eq.s32.totalorder %s18, 7
      %p35 = por %p33, %p34
      %p36 = scmp.ne.s32.totalorder %s28, %s31
      %p37 = scmp.eq.s32.totalorder %s18, 0
      %p38 = por %p36, %p37
      %p39 = scmp.ne.s32.totalorder %s28, %s31
      %p40 = scmp.eq.s32.totalorder %s23, 7
      %p41 = por %p39, %p40
      %p42 = scmp.ne.s32.totalorder %s31, %s32
      %p43 = scmp.eq.s32.totalorder %s23, 0
      %p44 = por %p42, %p43
      %p45 = scmp.ne.s32.totalorder %s31, %s32
      %p46 = scmp.eq.s32.totalorder %s24, 7
      %p47 = por %p45, %p46
      %p49 = scmp.ne.s32.totalorder %s32, %s48
      %p50 = scmp.eq.s32.totalorder %s24, 0
      %p51 = por %p49, %p50
      %s52 = ssub.s32 %s18, %s25
      %p53 = scmp.eq.s32.totalorder %s52, 0
      %s55 = sadd.s32 %s54, 1
      %s56 = scalar_select %p53, %s54, %s55
      %p59 = pneg %p53
      %p60 = scmp.eq.s32.totalorder %s18, 7
      %p61 = por %p59, %p60
      %p62 = scmp.ne.s32.totalorder %s54, %s57
      %p63 = scmp.eq.s32.totalorder %s18, 0
      %p64 = por %p62, %p63
      %p65 = scmp.ne.s32.totalorder %s54, %s57
      %p66 = scmp.eq.s32.totalorder %s23, 7
      %p67 = por %p65, %p66
      %p68 = scmp.ne.s32.totalorder %s57, %s58
      %p69 = scmp.eq.s32.totalorder %s23, 0
      %p70 = por %p68, %p69
      %p71 = scmp.ne.s32.totalorder %s57, %s58
      %p72 = scmp.eq.s32.totalorder %s24, 7
      %p73 = por %p71, %p72
      %p75 = scmp.ne.s32.totalorder %s58, %s74
      %p76 = scmp.eq.s32.totalorder %s24, 0
      %p77 = por %p75, %p76
      %s78 = ssub.s32 %s18, %s25
      %p79 = scmp.eq.s32.totalorder %s78, 0
      %s81 = sadd.s32 %s80, 1
      %s82 = scalar_select %p79, %s80, %s81
      %p85 = pneg %p79
      %p86 = scmp.eq.s32.totalorder %s18, 7
      %p87 = por %p85, %p86
      %p88 = scmp.ne.s32.totalorder %s80, %s83
      %p89 = scmp.eq.s32.totalorder %s18, 0
      %p90 = por %p88, %p89
      %p91 = scmp.ne.s32.totalorder %s80, %s83
      %p92 = scmp.eq.s32.totalorder %s23, 7
      %p93 = por %p91, %p92
      %p94 = scmp.ne.s32.totalorder %s83, %s84
      %p95 = scmp.eq.s32.totalorder %s23, 0
      %p96 = por %p94, %p95
      %p97 = scmp.ne.s32.totalorder %s83, %s84
      %p98 = scmp.eq.s32.totalorder %s24, 7
      %p99 = por %p97, %p98
      %p101 = scmp.ne.s32.totalorder %s84, %s100
      %p102 = scmp.eq.s32.totalorder %s24, 0
      %p103 = por %p101, %p102
      %p104 = scmp.le.s32.totalorder 1, %s18
      %p105 = scmp.lt.s32.totalorder %s18, 9
      %p106 = pnand %p104, %p105
      %p107 = pneg %p106
      // Predicated region
      $region9: #{tpu_custom_call.1} parent=5 // pred_check
        _
      $region10: #{tpu_custom_call.1} parent=5 // pred_check_branch
        %109 = sbr.rel (%p106) target = $region12
      $region11: #{tpu_custom_call.1} parent=5 // pred_region
        %s110 = ssub.s32 %s18, 1
      $region12: #{tpu_custom_call.1} parent=5 // pred_fallthru
        _
      %p111 = scmp.lt.s32.totalorder %s18, 8
      // Predicated region
      $region13: #{tpu_custom_call.1} parent=5 // pred_check
        %p112 = pneg %p111
      $region14: #{tpu_custom_call.1} parent=5 // pred_check_branch
        %114 = sbr.rel (%p112) target = $region16
      $region15: #{tpu_custom_call.1} parent=5 // pred_region
        // Predicated region
        $region17: #{tpu_custom_call.1} parent=15 // pred_check
          %p115 = pneg %p38
        $region18: #{tpu_custom_call.1} parent=15 // pred_check_branch
          %117 = sbr.rel (%p115) target = $region20
        $region19: #{tpu_custom_call.1} parent=15 // pred_region
          %s118 = sand.u32 %s28, 1
          %s119 = scalar_lea.sflag [#allocation3], %s118
          %s120 = sand.u32 %s28, 1
          %s121 = smul.addr %s120, 2048
          %s122 = scalar_lea.vmem [#allocation2], %s121
          %s123 = smul.u32 128, %s18
          %s125 = ssub.s32 32768, 32768
          %126 = vsyncadd %s119, %s125
          %s127 = smul.addr %s123, 2
          %s128 = smul.addr %s127, 128
          %s129 = scalar_lea.hbm %s0, %s128
          %s130 = sshll.u32 %s122, 4
          %s131 = int_to_ptr.vmem [resolvable:$true] %s130
          %136 = dma.hbm_to_vmem [thread:$0]  %s129, 32768, %s131, %s119, 256, 256, 16
        $region20: #{tpu_custom_call.1} parent=15 // pred_fallthru
          _
      $region16: #{tpu_custom_call.1} parent=5 // pred_fallthru
        _
      %p137 = scmp.le.s32.totalorder 1, %s18
      %p138 = scmp.lt.s32.totalorder %s18, 9
      %p139 = pnand %p137, %p138
      %p140 = pneg %p139
      // Predicated region
      $region21: #{tpu_custom_call.1} parent=5 // pred_check
        _
      $region22: #{tpu_custom_call.1} parent=5 // pred_check_branch
        %142 = sbr.rel (%p139) target = $region24
      $region23: #{tpu_custom_call.1} parent=5 // pred_region
        %s143 = ssub.s32 %s18, 1
        %s144 = sand.u32 %s31, 1
        %s145 = scalar_lea.sflag [#allocation3], %s144
        %s146 = sand.u32 %s31, 1
        %s147 = smul.addr %s146, 2048
        %s148 = scalar_lea.vmem [#allocation2], %s147
        // Predicated region
        $region25: #{tpu_custom_call.1} parent=23 // pred_check
          %p149 = pneg %p44
        $region26: #{tpu_custom_call.1} parent=23 // pred_check_branch
          %151 = sbr.rel (%p149) target = $region28
        $region27: #{tpu_custom_call.1} parent=23 // pred_region
          %152 = dma.done %s145, 32768
        $region28: #{tpu_custom_call.1} parent=23 // pred_fallthru
          _
        %s153 = sand.u32 %s31, 1
        %s154 = scalar_lea.sflag [#allocation3], %s153
        %s155 = sand.u32 %s31, 1
        %s156 = smul.addr %s155, 2048
        %s157 = scalar_lea.vmem [#allocation2], %s156
        %p158 = pneg %p44
        %p159 = pneg %p41
        %p160 = pneg %p70
        %p161 = pneg %p67
        %s162 = sand.u32 %s57, 1
        %s163 = scalar_lea.sflag [#allocation4], %s162
        %s164 = sand.u32 %s57, 1
        %s165 = smul.addr %s164, 1024
        %s166 = scalar_lea.vmem [#allocation5], %s165
        %p167 = pneg %p96
        %p168 = pneg %p93
        %s169 = sand.u32 %s83, 1
        %s170 = scalar_lea.sflag [#allocation7], %s169
        %s171 = sand.u32 %s83, 1
        %s172 = smul.addr %s171, 1024
        %s173 = scalar_lea.vmem [#allocation6], %s172
        %s174 = smul.u32 128, %s23
        %s175 = smul.u32 128, %s23
        %s176 = smul.u32 128, %s23
        %v177 = vld [vmem:[%s148] sm:$0xff]
        %v178 = vld [vmem:[%s148 + $0x10] sm:$0xff]
        %v179 = vld [vmem:[%s148 + $0x20] sm:$0xff]
        %v180 = vld [vmem:[%s148 + $0x30] sm:$0xff]
        %v181 = vld [vmem:[%s148 + $0x40] sm:$0xff]
        %v182 = vld [vmem:[%s148 + $0x50] sm:$0xff]
        %v183 = vld [vmem:[%s148 + $0x60] sm:$0xff]
        %v184 = vld [vmem:[%s148 + $0x70] sm:$0xff]
        %v185 = vld [vmem:[%s148 + $0x80] sm:$0xff]
        %v186 = vld [vmem:[%s148 + $0x90] sm:$0xff]
        %v187 = vld [vmem:[%s148 + $0xa0] sm:$0xff]
        %v188 = vld [vmem:[%s148 + $0xb0] sm:$0xff]
        %v189 = vld [vmem:[%s148 + $0xc0] sm:$0xff]
        %v190 = vld [vmem:[%s148 + $0xd0] sm:$0xff]
        %v191 = vld [vmem:[%s148 + $0xe0] sm:$0xff]
        %v192 = vld [vmem:[%s148 + $0xf0] sm:$0xff]
        %v193 = vld [vmem:[%s148 + $0x100] sm:$0xff]
        %v194 = vld [vmem:[%s148 + $0x110] sm:$0xff]
        %v195 = vld [vmem:[%s148 + $0x120] sm:$0xff]
        %v196 = vld [vmem:[%s148 + $0x130] sm:$0xff]
        %v197 = vld [vmem:[%s148 + $0x140] sm:$0xff]
        %v198 = vld [vmem:[%s148 + $0x150] sm:$0xff]
        %v199 = vld [vmem:[%s148 + $0x160] sm:$0xff]
        %v200 = vld [vmem:[%s148 + $0x170] sm:$0xff]
        %v201 = vld [vmem:[%s148 + $0x180] sm:$0xff]
        %v202 = vld [vmem:[%s148 + $0x190] sm:$0xff]
        %v203 = vld [vmem:[%s148 + $0x1a0] sm:$0xff]
        %v204 = vld [vmem:[%s148 + $0x1b0] sm:$0xff]
        %v205 = vld [vmem:[%s148 + $0x1c0] sm:$0xff]
        %v206 = vld [vmem:[%s148 + $0x1d0] sm:$0xff]
        %v207 = vld [vmem:[%s148 + $0x1e0] sm:$0xff]
        %v208 = vld [vmem:[%s148 + $0x1f0] sm:$0xff]
        %v209 = vld [vmem:[%s148 + $0x200] sm:$0xff]
        %v210 = vld [vmem:[%s148 + $0x210] sm:$0xff]
        %v211 = vld [vmem:[%s148 + $0x220] sm:$0xff]
        %v212 = vld [vmem:[%s148 + $0x230] sm:$0xff]
        %v213 = vld [vmem:[%s148 + $0x240] sm:$0xff]
        %v214 = vld [vmem:[%s148 + $0x250] sm:$0xff]
        %v215 = vld [vmem:[%s148 + $0x260] sm:$0xff]
        %v216 = vld [vmem:[%s148 + $0x270] sm:$0xff]
        %v217 = vld [vmem:[%s148 + $0x280] sm:$0xff]
        %v218 = vld [vmem:[%s148 + $0x290] sm:$0xff]
        %v219 = vld [vmem:[%s148 + $0x2a0] sm:$0xff]
        %v220 = vld [vmem:[%s148 + $0x2b0] sm:$0xff]
        %v221 = vld [vmem:[%s148 + $0x2c0] sm:$0xff]
        %v222 = vld [vmem:[%s148 + $0x2d0] sm:$0xff]
        %v223 = vld [vmem:[%s148 + $0x2e0] sm:$0xff]
        %v224 = vld [vmem:[%s148 + $0x2f0] sm:$0xff]
        %v225 = vld [vmem:[%s148 + $0x300] sm:$0xff]
        %v226 = vld [vmem:[%s148 + $0x310] sm:$0xff]
        %v227 = vld [vmem:[%s148 + $0x320] sm:$0xff]
        %v228 = vld [vmem:[%s148 + $0x330] sm:$0xff]
        %v229 = vld [vmem:[%s148 + $0x340] sm:$0xff]
        %v230 = vld [vmem:[%s148 + $0x350] sm:$0xff]
        %v231 = vld [vmem:[%s148 + $0x360] sm:$0xff]
        %v232 = vld [vmem:[%s148 + $0x370] sm:$0xff]
        %v233 = vld [vmem:[%s148 + $0x380] sm:$0xff]
        %v234 = vld [vmem:[%s148 + $0x390] sm:$0xff]
        %v235 = vld [vmem:[%s148 + $0x3a0] sm:$0xff]
        %v236 = vld [vmem:[%s148 + $0x3b0] sm:$0xff]
        %v237 = vld [vmem:[%s148 + $0x3c0] sm:$0xff]
        %v238 = vld [vmem:[%s148 + $0x3d0] sm:$0xff]
        %v239 = vld [vmem:[%s148 + $0x3e0] sm:$0xff]
        %v240 = vld [vmem:[%s148 + $0x3f0] sm:$0xff]
        %v241 = vld [vmem:[%s148 + $0x400] sm:$0xff]
        %v242 = vld [vmem:[%s148 + $0x410] sm:$0xff]
        %v243 = vld [vmem:[%s148 + $0x420] sm:$0xff]
        %v244 = vld [vmem:[%s148 + $0x430] sm:$0xff]
        %v245 = vld [vmem:[%s148 + $0x440] sm:$0xff]
        %v246 = vld [vmem:[%s148 + $0x450] sm:$0xff]
        %v247 = vld [vmem:[%s148 + $0x460] sm:$0xff]
        %v248 = vld [vmem:[%s148 + $0x470] sm:$0xff]
        %v249 = vld [vmem:[%s148 + $0x480] sm:$0xff]
        %v250 = vld [vmem:[%s148 + $0x490] sm:$0xff]
        %v251 = vld [vmem:[%s148 + $0x4a0] sm:$0xff]
        %v252 = vld [vmem:[%s148 + $0x4b0] sm:$0xff]
        %v253 = vld [vmem:[%s148 + $0x4c0] sm:$0xff]
        %v254 = vld [vmem:[%s148 + $0x4d0] sm:$0xff]
        %v255 = vld [vmem:[%s148 + $0x4e0] sm:$0xff]
        %v256 = vld [vmem:[%s148 + $0x4f0] sm:$0xff]
        %v257 = vld [vmem:[%s148 + $0x500] sm:$0xff]
        %v258 = vld [vmem:[%s148 + $0x510] sm:$0xff]
        %v259 = vld [vmem:[%s148 + $0x520] sm:$0xff]
        %v260 = vld [vmem:[%s148 + $0x530] sm:$0xff]
        %v261 = vld [vmem:[%s148 + $0x540] sm:$0xff]
        %v262 = vld [vmem:[%s148 + $0x550] sm:$0xff]
        %v263 = vld [vmem:[%s148 + $0x560] sm:$0xff]
        %v264 = vld [vmem:[%s148 + $0x570] sm:$0xff]
        %v265 = vld [vmem:[%s148 + $0x580] sm:$0xff]
        %v266 = vld [vmem:[%s148 + $0x590] sm:$0xff]
        %v267 = vld [vmem:[%s148 + $0x5a0] sm:$0xff]
        %v268 = vld [vmem:[%s148 + $0x5b0] sm:$0xff]
        %v269 = vld [vmem:[%s148 + $0x5c0] sm:$0xff]
        %v270 = vld [vmem:[%s148 + $0x5d0] sm:$0xff]
        %v271 = vld [vmem:[%s148 + $0x5e0] sm:$0xff]
        %v272 = vld [vmem:[%s148 + $0x5f0] sm:$0xff]
        %v273 = vld [vmem:[%s148 + $0x600] sm:$0xff]
        %v274 = vld [vmem:[%s148 + $0x610] sm:$0xff]
        %v275 = vld [vmem:[%s148 + $0x620] sm:$0xff]
        %v276 = vld [vmem:[%s148 + $0x630] sm:$0xff]
        %v277 = vld [vmem:[%s148 + $0x640] sm:$0xff]
        %v278 = vld [vmem:[%s148 + $0x650] sm:$0xff]
        %v279 = vld [vmem:[%s148 + $0x660] sm:$0xff]
        %v280 = vld [vmem:[%s148 + $0x670] sm:$0xff]
        %v281 = vld [vmem:[%s148 + $0x680] sm:$0xff]
        %v282 = vld [vmem:[%s148 + $0x690] sm:$0xff]
        %v283 = vld [vmem:[%s148 + $0x6a0] sm:$0xff]
        %v284 = vld [vmem:[%s148 + $0x6b0] sm:$0xff]
        %v285 = vld [vmem:[%s148 + $0x6c0] sm:$0xff]
        %v286 = vld [vmem:[%s148 + $0x6d0] sm:$0xff]
        %v287 = vld [vmem:[%s148 + $0x6e0] sm:$0xff]
        %v288 = vld [vmem:[%s148 + $0x6f0] sm:$0xff]
        %v289 = vld [vmem:[%s148 + $0x700] sm:$0xff]
        %v290 = vld [vmem:[%s148 + $0x710] sm:$0xff]
        %v291 = vld [vmem:[%s148 + $0x720] sm:$0xff]
        %v292 = vld [vmem:[%s148 + $0x730] sm:$0xff]
        %v293 = vld [vmem:[%s148 + $0x740] sm:$0xff]
        %v294 = vld [vmem:[%s148 + $0x750] sm:$0xff]
        %v295 = vld [vmem:[%s148 + $0x760] sm:$0xff]
        %v296 = vld [vmem:[%s148 + $0x770] sm:$0xff]
        %v297 = vld [vmem:[%s148 + $0x780] sm:$0xff]
        %v298 = vld [vmem:[%s148 + $0x790] sm:$0xff]
        %v299 = vld [vmem:[%s148 + $0x7a0] sm:$0xff]
        %v300 = vld [vmem:[%s148 + $0x7b0] sm:$0xff]
        %v301 = vld [vmem:[%s148 + $0x7c0] sm:$0xff]
        %v302 = vld [vmem:[%s148 + $0x7d0] sm:$0xff]
        %v303 = vld [vmem:[%s148 + $0x7e0] sm:$0xff]
        %v304 = vld [vmem:[%s148 + $0x7f0] sm:$0xff]
        %305 = vst [vmem:[%s166] sm:$0xff] %v177
        %306 = vst [vmem:[%s166 + $0x8] sm:$0xff] %v178
        %307 = vst [vmem:[%s166 + $0x10] sm:$0xff] %v179
        %308 = vst [vmem:[%s166 + $0x18] sm:$0xff] %v180
        %309 = vst [vmem:[%s166 + $0x20] sm:$0xff] %v181
        %310 = vst [vmem:[%s166 + $0x28] sm:$0xff] %v182
        %311 = vst [vmem:[%s166 + $0x30] sm:$0xff] %v183
        %312 = vst [vmem:[%s166 + $0x38] sm:$0xff] %v184
        %313 = vst [vmem:[%s166 + $0x40] sm:$0xff] %v185
        %314 = vst [vmem:[%s166 + $0x48] sm:$0xff] %v186
        %315 = vst [vmem:[%s166 + $0x50] sm:$0xff] %v187
        %316 = vst [vmem:[%s166 + $0x58] sm:$0xff] %v188
        %317 = vst [vmem:[%s166 + $0x60] sm:$0xff] %v189
        %318 = vst [vmem:[%s166 + $0x68] sm:$0xff] %v190
        %319 = vst [vmem:[%s166 + $0x70] sm:$0xff] %v191
        %320 = vst [vmem:[%s166 + $0x78] sm:$0xff] %v192
        %321 = vst [vmem:[%s166 + $0x80] sm:$0xff] %v193
        %322 = vst [vmem:[%s166 + $0x88] sm:$0xff] %v194
        %323 = vst [vmem:[%s166 + $0x90] sm:$0xff] %v195
        %324 = vst [vmem:[%s166 + $0x98] sm:$0xff] %v196
        %325 = vst [vmem:[%s166 + $0xa0] sm:$0xff] %v197
        %326 = vst [vmem:[%s166 + $0xa8] sm:$0xff] %v198
        %327 = vst [vmem:[%s166 + $0xb0] sm:$0xff] %v199
        %328 = vst [vmem:[%s166 + $0xb8] sm:$0xff] %v200
        %329 = vst [vmem:[%s166 + $0xc0] sm:$0xff] %v201
        %330 = vst [vmem:[%s166 + $0xc8] sm:$0xff] %v202
        %331 = vst [vmem:[%s166 + $0xd0] sm:$0xff] %v203
        %332 = vst [vmem:[%s166 + $0xd8] sm:$0xff] %v204
        %333 = vst [vmem:[%s166 + $0xe0] sm:$0xff] %v205
        %334 = vst [vmem:[%s166 + $0xe8] sm:$0xff] %v206
        %335 = vst [vmem:[%s166 + $0xf0] sm:$0xff] %v207
        %336 = vst [vmem:[%s166 + $0xf8] sm:$0xff] %v208
        %337 = vst [vmem:[%s166 + $0x100] sm:$0xff] %v209
        %338 = vst [vmem:[%s166 + $0x108] sm:$0xff] %v210
        %339 = vst [vmem:[%s166 + $0x110] sm:$0xff] %v211
        %340 = vst [vmem:[%s166 + $0x118] sm:$0xff] %v212
        %341 = vst [vmem:[%s166 + $0x120] sm:$0xff] %v213
        %342 = vst [vmem:[%s166 + $0x128] sm:$0xff] %v214
        %343 = vst [vmem:[%s166 + $0x130] sm:$0xff] %v215
        %344 = vst [vmem:[%s166 + $0x138] sm:$0xff] %v216
        %345 = vst [vmem:[%s166 + $0x140] sm:$0xff] %v217
        %346 = vst [vmem:[%s166 + $0x148] sm:$0xff] %v218
        %347 = vst [vmem:[%s166 + $0x150] sm:$0xff] %v219
        %348 = vst [vmem:[%s166 + $0x158] sm:$0xff] %v220
        %349 = vst [vmem:[%s166 + $0x160] sm:$0xff] %v221
        %350 = vst [vmem:[%s166 + $0x168] sm:$0xff] %v222
        %351 = vst [vmem:[%s166 + $0x170] sm:$0xff] %v223
        %352 = vst [vmem:[%s166 + $0x178] sm:$0xff] %v224
        %353 = vst [vmem:[%s166 + $0x180] sm:$0xff] %v225
        %354 = vst [vmem:[%s166 + $0x188] sm:$0xff] %v226
        %355 = vst [vmem:[%s166 + $0x190] sm:$0xff] %v227
        %356 = vst [vmem:[%s166 + $0x198] sm:$0xff] %v228
        %357 = vst [vmem:[%s166 + $0x1a0] sm:$0xff] %v229
        %358 = vst [vmem:[%s166 + $0x1a8] sm:$0xff] %v230
        %359 = vst [vmem:[%s166 + $0x1b0] sm:$0xff] %v231
        %360 = vst [vmem:[%s166 + $0x1b8] sm:$0xff] %v232
        %361 = vst [vmem:[%s166 + $0x1c0] sm:$0xff] %v233
        %362 = vst [vmem:[%s166 + $0x1c8] sm:$0xff] %v234
        %363 = vst [vmem:[%s166 + $0x1d0] sm:$0xff] %v235
        %364 = vst [vmem:[%s166 + $0x1d8] sm:$0xff] %v236
        %365 = vst [vmem:[%s166 + $0x1e0] sm:$0xff] %v237
        %366 = vst [vmem:[%s166 + $0x1e8] sm:$0xff] %v238
        %367 = vst [vmem:[%s166 + $0x1f0] sm:$0xff] %v239
        %368 = vst [vmem:[%s166 + $0x1f8] sm:$0xff] %v240
        %369 = vst [vmem:[%s166 + $0x200] sm:$0xff] %v241
        %370 = vst [vmem:[%s166 + $0x208] sm:$0xff] %v242
        %371 = vst [vmem:[%s166 + $0x210] sm:$0xff] %v243
        %372 = vst [vmem:[%s166 + $0x218] sm:$0xff] %v244
        %373 = vst [vmem:[%s166 + $0x220] sm:$0xff] %v245
        %374 = vst [vmem:[%s166 + $0x228] sm:$0xff] %v246
        %375 = vst [vmem:[%s166 + $0x230] sm:$0xff] %v247
        %376 = vst [vmem:[%s166 + $0x238] sm:$0xff] %v248
        %377 = vst [vmem:[%s166 + $0x240] sm:$0xff] %v249
        %378 = vst [vmem:[%s166 + $0x248] sm:$0xff] %v250
        %379 = vst [vmem:[%s166 + $0x250] sm:$0xff] %v251
        %380 = vst [vmem:[%s166 + $0x258] sm:$0xff] %v252
        %381 = vst [vmem:[%s166 + $0x260] sm:$0xff] %v253
        %382 = vst [vmem:[%s166 + $0x268] sm:$0xff] %v254
        %383 = vst [vmem:[%s166 + $0x270] sm:$0xff] %v255
        %384 = vst [vmem:[%s166 + $0x278] sm:$0xff] %v256
        %385 = vst [vmem:[%s166 + $0x280] sm:$0xff] %v257
        %386 = vst [vmem:[%s166 + $0x288] sm:$0xff] %v258
        %387 = vst [vmem:[%s166 + $0x290] sm:$0xff] %v259
        %388 = vst [vmem:[%s166 + $0x298] sm:$0xff] %v260
        %389 = vst [vmem:[%s166 + $0x2a0] sm:$0xff] %v261
        %390 = vst [vmem:[%s166 + $0x2a8] sm:$0xff] %v262
        %391 = vst [vmem:[%s166 + $0x2b0] sm:$0xff] %v263
        %392 = vst [vmem:[%s166 + $0x2b8] sm:$0xff] %v264
        %393 = vst [vmem:[%s166 + $0x2c0] sm:$0xff] %v265
        %394 = vst [vmem:[%s166 + $0x2c8] sm:$0xff] %v266
        %395 = vst [vmem:[%s166 + $0x2d0] sm:$0xff] %v267
        %396 = vst [vmem:[%s166 + $0x2d8] sm:$0xff] %v268
        %397 = vst [vmem:[%s166 + $0x2e0] sm:$0xff] %v269
        %398 = vst [vmem:[%s166 + $0x2e8] sm:$0xff] %v270
        %399 = vst [vmem:[%s166 + $0x2f0] sm:$0xff] %v271
        %400 = vst [vmem:[%s166 + $0x2f8] sm:$0xff] %v272
        %401 = vst [vmem:[%s166 + $0x300] sm:$0xff] %v273
        %402 = vst [vmem:[%s166 + $0x308] sm:$0xff] %v274
        %403 = vst [vmem:[%s166 + $0x310] sm:$0xff] %v275
        %404 = vst [vmem:[%s166 + $0x318] sm:$0xff] %v276
        %405 = vst [vmem:[%s166 + $0x320] sm:$0xff] %v277
        %406 = vst [vmem:[%s166 + $0x328] sm:$0xff] %v278
        %407 = vst [vmem:[%s166 + $0x330] sm:$0xff] %v279
        %408 = vst [vmem:[%s166 + $0x338] sm:$0xff] %v280
        %409 = vst [vmem:[%s166 + $0x340] sm:$0xff] %v281
        %410 = vst [vmem:[%s166 + $0x348] sm:$0xff] %v282
        %411 = vst [vmem:[%s166 + $0x350] sm:$0xff] %v283
        %412 = vst [vmem:[%s166 + $0x358] sm:$0xff] %v284
        %413 = vst [vmem:[%s166 + $0x360] sm:$0xff] %v285
        %414 = vst [vmem:[%s166 + $0x368] sm:$0xff] %v286
        %415 = vst [vmem:[%s166 + $0x370] sm:$0xff] %v287
        %416 = vst [vmem:[%s166 + $0x378] sm:$0xff] %v288
        %417 = vst [vmem:[%s166 + $0x380] sm:$0xff] %v289
        %418 = vst [vmem:[%s166 + $0x388] sm:$0xff] %v290
        %419 = vst [vmem:[%s166 + $0x390] sm:$0xff] %v291
        %420 = vst [vmem:[%s166 + $0x398] sm:$0xff] %v292
        %421 = vst [vmem:[%s166 + $0x3a0] sm:$0xff] %v293
        %422 = vst [vmem:[%s166 + $0x3a8] sm:$0xff] %v294
        %423 = vst [vmem:[%s166 + $0x3b0] sm:$0xff] %v295
        %424 = vst [vmem:[%s166 + $0x3b8] sm:$0xff] %v296
        %425 = vst [vmem:[%s166 + $0x3c0] sm:$0xff] %v297
        %426 = vst [vmem:[%s166 + $0x3c8] sm:$0xff] %v298
        %427 = vst [vmem:[%s166 + $0x3d0] sm:$0xff] %v299
        %428 = vst [vmem:[%s166 + $0x3d8] sm:$0xff] %v300
        %429 = vst [vmem:[%s166 + $0x3e0] sm:$0xff] %v301
        %430 = vst [vmem:[%s166 + $0x3e8] sm:$0xff] %v302
        %431 = vst [vmem:[%s166 + $0x3f0] sm:$0xff] %v303
        %432 = vst [vmem:[%s166 + $0x3f8] sm:$0xff] %v304
        %v433 = vld [vmem:[%s148 + $0x8] sm:$0xff]
        %v434 = vld [vmem:[%s148 + $0x18] sm:$0xff]
        %v435 = vld [vmem:[%s148 + $0x28] sm:$0xff]
        %v436 = vld [vmem:[%s148 + $0x38] sm:$0xff]
        %v437 = vld [vmem:[%s148 + $0x48] sm:$0xff]
        %v438 = vld [vmem:[%s148 + $0x58] sm:$0xff]
        %v439 = vld [vmem:[%s148 + $0x68] sm:$0xff]
        %v440 = vld [vmem:[%s148 + $0x78] sm:$0xff]
        %v441 = vld [vmem:[%s148 + $0x88] sm:$0xff]
        %v442 = vld [vmem:[%s148 + $0x98] sm:$0xff]
        %v443 = vld [vmem:[%s148 + $0xa8] sm:$0xff]
        %v444 = vld [vmem:[%s148 + $0xb8] sm:$0xff]
        %v445 = vld [vmem:[%s148 + $0xc8] sm:$0xff]
        %v446 = vld [vmem:[%s148 + $0xd8] sm:$0xff]
        %v447 = vld [vmem:[%s148 + $0xe8] sm:$0xff]
        %v448 = vld [vmem:[%s148 + $0xf8] sm:$0xff]
        %v449 = vld [vmem:[%s148 + $0x108] sm:$0xff]
        %v450 = vld [vmem:[%s148 + $0x118] sm:$0xff]
        %v451 = vld [vmem:[%s148 + $0x128] sm:$0xff]
        %v452 = vld [vmem:[%s148 + $0x138] sm:$0xff]
        %v453 = vld [vmem:[%s148 + $0x148] sm:$0xff]
        %v454 = vld [vmem:[%s148 + $0x158] sm:$0xff]
        %v455 = vld [vmem:[%s148 + $0x168] sm:$0xff]
        %v456 = vld [vmem:[%s148 + $0x178] sm:$0xff]
        %v457 = vld [vmem:[%s148 + $0x188] sm:$0xff]
        %v458 = vld [vmem:[%s148 + $0x198] sm:$0xff]
        %v459 = vld [vmem:[%s148 + $0x1a8] sm:$0xff]
        %v460 = vld [vmem:[%s148 + $0x1b8] sm:$0xff]
        %v461 = vld [vmem:[%s148 + $0x1c8] sm:$0xff]
        %v462 = vld [vmem:[%s148 + $0x1d8] sm:$0xff]
        %v463 = vld [vmem:[%s148 + $0x1e8] sm:$0xff]
        %v464 = vld [vmem:[%s148 + $0x1f8] sm:$0xff]
        %v465 = vld [vmem:[%s148 + $0x208] sm:$0xff]
        %v466 = vld [vmem:[%s148 + $0x218] sm:$0xff]
        %v467 = vld [vmem:[%s148 + $0x228] sm:$0xff]
        %v468 = vld [vmem:[%s148 + $0x238] sm:$0xff]
        %v469 = vld [vmem:[%s148 + $0x248] sm:$0xff]
        %v470 = vld [vmem:[%s148 + $0x258] sm:$0xff]
        %v471 = vld [vmem:[%s148 + $0x268] sm:$0xff]
        %v472 = vld [vmem:[%s148 + $0x278] sm:$0xff]
        %v473 = vld [vmem:[%s148 + $0x288] sm:$0xff]
        %v474 = vld [vmem:[%s148 + $0x298] sm:$0xff]
        %v475 = vld [vmem:[%s148 + $0x2a8] sm:$0xff]
        %v476 = vld [vmem:[%s148 + $0x2b8] sm:$0xff]
        %v477 = vld [vmem:[%s148 + $0x2c8] sm:$0xff]
        %v478 = vld [vmem:[%s148 + $0x2d8] sm:$0xff]
        %v479 = vld [vmem:[%s148 + $0x2e8] sm:$0xff]
        %v480 = vld [vmem:[%s148 + $0x2f8] sm:$0xff]
        %v481 = vld [vmem:[%s148 + $0x308] sm:$0xff]
        %v482 = vld [vmem:[%s148 + $0x318] sm:$0xff]
        %v483 = vld [vmem:[%s148 + $0x328] sm:$0xff]
        %v484 = vld [vmem:[%s148 + $0x338] sm:$0xff]
        %v485 = vld [vmem:[%s148 + $0x348] sm:$0xff]
        %v486 = vld [vmem:[%s148 + $0x358] sm:$0xff]
        %v487 = vld [vmem:[%s148 + $0x368] sm:$0xff]
        %v488 = vld [vmem:[%s148 + $0x378] sm:$0xff]
        %v489 = vld [vmem:[%s148 + $0x388] sm:$0xff]
        %v490 = vld [vmem:[%s148 + $0x398] sm:$0xff]
        %v491 = vld [vmem:[%s148 + $0x3a8] sm:$0xff]
        %v492 = vld [vmem:[%s148 + $0x3b8] sm:$0xff]
        %v493 = vld [vmem:[%s148 + $0x3c8] sm:$0xff]
        %v494 = vld [vmem:[%s148 + $0x3d8] sm:$0xff]
        %v495 = vld [vmem:[%s148 + $0x3e8] sm:$0xff]
        %v496 = vld [vmem:[%s148 + $0x3f8] sm:$0xff]
        %v497 = vld [vmem:[%s148 + $0x408] sm:$0xff]
        %v498 = vld [vmem:[%s148 + $0x418] sm:$0xff]
        %v499 = vld [vmem:[%s148 + $0x428] sm:$0xff]
        %v500 = vld [vmem:[%s148 + $0x438] sm:$0xff]
        %v501 = vld [vmem:[%s148 + $0x448] sm:$0xff]
        %v502 = vld [vmem:[%s148 + $0x458] sm:$0xff]
        %v503 = vld [vmem:[%s148 + $0x468] sm:$0xff]
        %v504 = vld [vmem:[%s148 + $0x478] sm:$0xff]
        %v505 = vld [vmem:[%s148 + $0x488] sm:$0xff]
        %v506 = vld [vmem:[%s148 + $0x498] sm:$0xff]
        %v507 = vld [vmem:[%s148 + $0x4a8] sm:$0xff]
        %v508 = vld [vmem:[%s148 + $0x4b8] sm:$0xff]
        %v509 = vld [vmem:[%s148 + $0x4c8] sm:$0xff]
        %v510 = vld [vmem:[%s148 + $0x4d8] sm:$0xff]
        %v511 = vld [vmem:[%s148 + $0x4e8] sm:$0xff]
        %v512 = vld [vmem:[%s148 + $0x4f8] sm:$0xff]
        %v513 = vld [vmem:[%s148 + $0x508] sm:$0xff]
        %v514 = vld [vmem:[%s148 + $0x518] sm:$0xff]
        %v515 = vld [vmem:[%s148 + $0x528] sm:$0xff]
        %v516 = vld [vmem:[%s148 + $0x538] sm:$0xff]
        %v517 = vld [vmem:[%s148 + $0x548] sm:$0xff]
        %v518 = vld [vmem:[%s148 + $0x558] sm:$0xff]
        %v519 = vld [vmem:[%s148 + $0x568] sm:$0xff]
        %v520 = vld [vmem:[%s148 + $0x578] sm:$0xff]
        %v521 = vld [vmem:[%s148 + $0x588] sm:$0xff]
        %v522 = vld [vmem:[%s148 + $0x598] sm:$0xff]
        %v523 = vld [vmem:[%s148 + $0x5a8] sm:$0xff]
        %v524 = vld [vmem:[%s148 + $0x5b8] sm:$0xff]
        %v525 = vld [vmem:[%s148 + $0x5c8] sm:$0xff]
        %v526 = vld [vmem:[%s148 + $0x5d8] sm:$0xff]
        %v527 = vld [vmem:[%s148 + $0x5e8] sm:$0xff]
        %v528 = vld [vmem:[%s148 + $0x5f8] sm:$0xff]
        %v529 = vld [vmem:[%s148 + $0x608] sm:$0xff]
        %v530 = vld [vmem:[%s148 + $0x618] sm:$0xff]
        %v531 = vld [vmem:[%s148 + $0x628] sm:$0xff]
        %v532 = vld [vmem:[%s148 + $0x638] sm:$0xff]
        %v533 = vld [vmem:[%s148 + $0x648] sm:$0xff]
        %v534 = vld [vmem:[%s148 + $0x658] sm:$0xff]
        %v535 = vld [vmem:[%s148 + $0x668] sm:$0xff]
        %v536 = vld [vmem:[%s148 + $0x678] sm:$0xff]
        %v537 = vld [vmem:[%s148 + $0x688] sm:$0xff]
        %v538 = vld [vmem:[%s148 + $0x698] sm:$0xff]
        %v539 = vld [vmem:[%s148 + $0x6a8] sm:$0xff]
        %v540 = vld [vmem:[%s148 + $0x6b8] sm:$0xff]
        %v541 = vld [vmem:[%s148 + $0x6c8] sm:$0xff]
        %v542 = vld [vmem:[%s148 + $0x6d8] sm:$0xff]
        %v543 = vld [vmem:[%s148 + $0x6e8] sm:$0xff]
        %v544 = vld [vmem:[%s148 + $0x6f8] sm:$0xff]
        %v545 = vld [vmem:[%s148 + $0x708] sm:$0xff]
        %v546 = vld [vmem:[%s148 + $0x718] sm:$0xff]
        %v547 = vld [vmem:[%s148 + $0x728] sm:$0xff]
        %v548 = vld [vmem:[%s148 + $0x738] sm:$0xff]
        %v549 = vld [vmem:[%s148 + $0x748] sm:$0xff]
        %v550 = vld [vmem:[%s148 + $0x758] sm:$0xff]
        %v551 = vld [vmem:[%s148 + $0x768] sm:$0xff]
        %v552 = vld [vmem:[%s148 + $0x778] sm:$0xff]
        %v553 = vld [vmem:[%s148 + $0x788] sm:$0xff]
        %v554 = vld [vmem:[%s148 + $0x798] sm:$0xff]
        %v555 = vld [vmem:[%s148 + $0x7a8] sm:$0xff]
        %v556 = vld [vmem:[%s148 + $0x7b8] sm:$0xff]
        %v557 = vld [vmem:[%s148 + $0x7c8] sm:$0xff]
        %v558 = vld [vmem:[%s148 + $0x7d8] sm:$0xff]
        %v559 = vld [vmem:[%s148 + $0x7e8] sm:$0xff]
        %v560 = vld [vmem:[%s148 + $0x7f8] sm:$0xff]
        %v561 = vmul.f32 %v433, 0.45
        %v562 = vmul.f32 %v434, 0.45
        %v563 = vmul.f32 %v435, 0.45
        %v564 = vmul.f32 %v436, 0.45
        %v565 = vmul.f32 %v437, 0.45
        %v566 = vmul.f32 %v438, 0.45
        %v567 = vmul.f32 %v439, 0.45
        %v568 = vmul.f32 %v440, 0.45
        %v569 = vmul.f32 %v441, 0.45
        %v570 = vmul.f32 %v442, 0.45
        %v571 = vmul.f32 %v443, 0.45
        %v572 = vmul.f32 %v444, 0.45
        %v573 = vmul.f32 %v445, 0.45
        %v574 = vmul.f32 %v446, 0.45
        %v575 = vmul.f32 %v447, 0.45
        %v576 = vmul.f32 %v448, 0.45
        %v577 = vmul.f32 %v449, 0.45
        %v578 = vmul.f32 %v450, 0.45
        %v579 = vmul.f32 %v451, 0.45
        %v580 = vmul.f32 %v452, 0.45
        %v581 = vmul.f32 %v453, 0.45
        %v582 = vmul.f32 %v454, 0.45
        %v583 = vmul.f32 %v455, 0.45
        %v584 = vmul.f32 %v456, 0.45
        %v585 = vmul.f32 %v457, 0.45
        %v586 = vmul.f32 %v458, 0.45
        %v587 = vmul.f32 %v459, 0.45
        %v588 = vmul.f32 %v460, 0.45
        %v589 = vmul.f32 %v461, 0.45
        %v590 = vmul.f32 %v462, 0.45
        %v591 = vmul.f32 %v463, 0.45
        %v592 = vmul.f32 %v464, 0.45
        %v593 = vmul.f32 %v465, 0.45
        %v594 = vmul.f32 %v466, 0.45
        %v595 = vmul.f32 %v467, 0.45
        %v596 = vmul.f32 %v468, 0.45
        %v597 = vmul.f32 %v469, 0.45
        %v598 = vmul.f32 %v470, 0.45
        %v599 = vmul.f32 %v471, 0.45
        %v600 = vmul.f32 %v472, 0.45
        %v601 = vmul.f32 %v473, 0.45
        %v602 = vmul.f32 %v474, 0.45
        %v603 = vmul.f32 %v475, 0.45
        %v604 = vmul.f32 %v476, 0.45
        %v605 = vmul.f32 %v477, 0.45
        %v606 = vmul.f32 %v478, 0.45
        %v607 = vmul.f32 %v479, 0.45
        %v608 = vmul.f32 %v480, 0.45
        %v609 = vmul.f32 %v481, 0.45
        %v610 = vmul.f32 %v482, 0.45
        %v611 = vmul.f32 %v483, 0.45
        %v612 = vmul.f32 %v484, 0.45
        %v613 = vmul.f32 %v485, 0.45
        %v614 = vmul.f32 %v486, 0.45
        %v615 = vmul.f32 %v487, 0.45
        %v616 = vmul.f32 %v488, 0.45
        %v617 = vmul.f32 %v489, 0.45
        %v618 = vmul.f32 %v490, 0.45
        %v619 = vmul.f32 %v491, 0.45
        %v620 = vmul.f32 %v492, 0.45
        %v621 = vmul.f32 %v493, 0.45
        %v622 = vmul.f32 %v494, 0.45
        %v623 = vmul.f32 %v495, 0.45
        %v624 = vmul.f32 %v496, 0.45
        %v625 = vmul.f32 %v497, 0.45
        %v626 = vmul.f32 %v498, 0.45
        %v627 = vmul.f32 %v499, 0.45
        %v628 = vmul.f32 %v500, 0.45
        %v629 = vmul.f32 %v501, 0.45
        %v630 = vmul.f32 %v502, 0.45
        %v631 = vmul.f32 %v503, 0.45
        %v632 = vmul.f32 %v504, 0.45
        %v633 = vmul.f32 %v505, 0.45
        %v634 = vmul.f32 %v506, 0.45
        %v635 = vmul.f32 %v507, 0.45
        %v636 = vmul.f32 %v508, 0.45
        %v637 = vmul.f32 %v509, 0.45
        %v638 = vmul.f32 %v510, 0.45
        %v639 = vmul.f32 %v511, 0.45
        %v640 = vmul.f32 %v512, 0.45
        %v641 = vmul.f32 %v513, 0.45
        %v642 = vmul.f32 %v514, 0.45
        %v643 = vmul.f32 %v515, 0.45
        %v644 = vmul.f32 %v516, 0.45
        %v645 = vmul.f32 %v517, 0.45
        %v646 = vmul.f32 %v518, 0.45
        %v647 = vmul.f32 %v519, 0.45
        %v648 = vmul.f32 %v520, 0.45
        %v649 = vmul.f32 %v521, 0.45
        %v650 = vmul.f32 %v522, 0.45
        %v651 = vmul.f32 %v523, 0.45
        %v652 = vmul.f32 %v524, 0.45
        %v653 = vmul.f32 %v525, 0.45
        %v654 = vmul.f32 %v526, 0.45
        %v655 = vmul.f32 %v527, 0.45
        %v656 = vmul.f32 %v528, 0.45
        %v657 = vmul.f32 %v529, 0.45
        %v658 = vmul.f32 %v530, 0.45
        %v659 = vmul.f32 %v531, 0.45
        %v660 = vmul.f32 %v532, 0.45
        %v661 = vmul.f32 %v533, 0.45
        %v662 = vmul.f32 %v534, 0.45
        %v663 = vmul.f32 %v535, 0.45
        %v664 = vmul.f32 %v536, 0.45
        %v665 = vmul.f32 %v537, 0.45
        %v666 = vmul.f32 %v538, 0.45
        %v667 = vmul.f32 %v539, 0.45
        %v668 = vmul.f32 %v540, 0.45
        %v669 = vmul.f32 %v541, 0.45
        %v670 = vmul.f32 %v542, 0.45
        %v671 = vmul.f32 %v543, 0.45
        %v672 = vmul.f32 %v544, 0.45
        %v673 = vmul.f32 %v545, 0.45
        %v674 = vmul.f32 %v546, 0.45
        %v675 = vmul.f32 %v547, 0.45
        %v676 = vmul.f32 %v548, 0.45
        %v677 = vmul.f32 %v549, 0.45
        %v678 = vmul.f32 %v550, 0.45
        %v679 = vmul.f32 %v551, 0.45
        %v680 = vmul.f32 %v552, 0.45
        %v681 = vmul.f32 %v553, 0.45
        %v682 = vmul.f32 %v554, 0.45
        %v683 = vmul.f32 %v555, 0.45
        %v684 = vmul.f32 %v556, 0.45
        %v685 = vmul.f32 %v557, 0.45
        %v686 = vmul.f32 %v558, 0.45
        %v687 = vmul.f32 %v559, 0.45
        %v688 = vmul.f32 %v560, 0.45
        %v689 = vadd.f32 %v561, 0.55
        %v690 = vadd.f32 %v562, 0.55
        %v691 = vadd.f32 %v563, 0.55
        %v692 = vadd.f32 %v564, 0.55
        %v693 = vadd.f32 %v565, 0.55
        %v694 = vadd.f32 %v566, 0.55
        %v695 = vadd.f32 %v567, 0.55
        %v696 = vadd.f32 %v568, 0.55
        %v697 = vadd.f32 %v569, 0.55
        %v698 = vadd.f32 %v570, 0.55
        %v699 = vadd.f32 %v571, 0.55
        %v700 = vadd.f32 %v572, 0.55
        %v701 = vadd.f32 %v573, 0.55
        %v702 = vadd.f32 %v574, 0.55
        %v703 = vadd.f32 %v575, 0.55
        %v704 = vadd.f32 %v576, 0.55
        %v705 = vadd.f32 %v577, 0.55
        %v706 = vadd.f32 %v578, 0.55
        %v707 = vadd.f32 %v579, 0.55
        %v708 = vadd.f32 %v580, 0.55
        %v709 = vadd.f32 %v581, 0.55
        %v710 = vadd.f32 %v582, 0.55
        %v711 = vadd.f32 %v583, 0.55
        %v712 = vadd.f32 %v584, 0.55
        %v713 = vadd.f32 %v585, 0.55
        %v714 = vadd.f32 %v586, 0.55
        %v715 = vadd.f32 %v587, 0.55
        %v716 = vadd.f32 %v588, 0.55
        %v717 = vadd.f32 %v589, 0.55
        %v718 = vadd.f32 %v590, 0.55
        %v719 = vadd.f32 %v591, 0.55
        %v720 = vadd.f32 %v592, 0.55
        %v721 = vadd.f32 %v593, 0.55
        %v722 = vadd.f32 %v594, 0.55
        %v723 = vadd.f32 %v595, 0.55
        %v724 = vadd.f32 %v596, 0.55
        %v725 = vadd.f32 %v597, 0.55
        %v726 = vadd.f32 %v598, 0.55
        %v727 = vadd.f32 %v599, 0.55
        %v728 = vadd.f32 %v600, 0.55
        %v729 = vadd.f32 %v601, 0.55
        %v730 = vadd.f32 %v602, 0.55
        %v731 = vadd.f32 %v603, 0.55
        %v732 = vadd.f32 %v604, 0.55
        %v733 = vadd.f32 %v605, 0.55
        %v734 = vadd.f32 %v606, 0.55
        %v735 = vadd.f32 %v607, 0.55
        %v736 = vadd.f32 %v608, 0.55
        %v737 = vadd.f32 %v609, 0.55
        %v738 = vadd.f32 %v610, 0.55
        %v739 = vadd.f32 %v611, 0.55
        %v740 = vadd.f32 %v612, 0.55
        %v741 = vadd.f32 %v613, 0.55
        %v742 = vadd.f32 %v614, 0.55
        %v743 = vadd.f32 %v615, 0.55
        %v744 = vadd.f32 %v616, 0.55
        %v745 = vadd.f32 %v617, 0.55
        %v746 = vadd.f32 %v618, 0.55
        %v747 = vadd.f32 %v619, 0.55
        %v748 = vadd.f32 %v620, 0.55
        %v749 = vadd.f32 %v621, 0.55
        %v750 = vadd.f32 %v622, 0.55
        %v751 = vadd.f32 %v623, 0.55
        %v752 = vadd.f32 %v624, 0.55
        %v753 = vadd.f32 %v625, 0.55
        %v754 = vadd.f32 %v626, 0.55
        %v755 = vadd.f32 %v627, 0.55
        %v756 = vadd.f32 %v628, 0.55
        %v757 = vadd.f32 %v629, 0.55
        %v758 = vadd.f32 %v630, 0.55
        %v759 = vadd.f32 %v631, 0.55
        %v760 = vadd.f32 %v632, 0.55
        %v761 = vadd.f32 %v633, 0.55
        %v762 = vadd.f32 %v634, 0.55
        %v763 = vadd.f32 %v635, 0.55
        %v764 = vadd.f32 %v636, 0.55
        %v765 = vadd.f32 %v637, 0.55
        %v766 = vadd.f32 %v638, 0.55
        %v767 = vadd.f32 %v639, 0.55
        %v768 = vadd.f32 %v640, 0.55
        %v769 = vadd.f32 %v641, 0.55
        %v770 = vadd.f32 %v642, 0.55
        %v771 = vadd.f32 %v643, 0.55
        %v772 = vadd.f32 %v644, 0.55
        %v773 = vadd.f32 %v645, 0.55
        %v774 = vadd.f32 %v646, 0.55
        %v775 = vadd.f32 %v647, 0.55
        %v776 = vadd.f32 %v648, 0.55
        %v777 = vadd.f32 %v649, 0.55
        %v778 = vadd.f32 %v650, 0.55
        %v779 = vadd.f32 %v651, 0.55
        %v780 = vadd.f32 %v652, 0.55
        %v781 = vadd.f32 %v653, 0.55
        %v782 = vadd.f32 %v654, 0.55
        %v783 = vadd.f32 %v655, 0.55
        %v784 = vadd.f32 %v656, 0.55
        %v785 = vadd.f32 %v657, 0.55
        %v786 = vadd.f32 %v658, 0.55
        %v787 = vadd.f32 %v659, 0.55
        %v788 = vadd.f32 %v660, 0.55
        %v789 = vadd.f32 %v661, 0.55
        %v790 = vadd.f32 %v662, 0.55
        %v791 = vadd.f32 %v663, 0.55
        %v792 = vadd.f32 %v664, 0.55
        %v793 = vadd.f32 %v665, 0.55
        %v794 = vadd.f32 %v666, 0.55
        %v795 = vadd.f32 %v667, 0.55
        %v796 = vadd.f32 %v668, 0.55
        %v797 = vadd.f32 %v669, 0.55
        %v798 = vadd.f32 %v670, 0.55
        %v799 = vadd.f32 %v671, 0.55
        %v800 = vadd.f32 %v672, 0.55
        %v801 = vadd.f32 %v673, 0.55
        %v802 = vadd.f32 %v674, 0.55
        %v803 = vadd.f32 %v675, 0.55
        %v804 = vadd.f32 %v676, 0.55
        %v805 = vadd.f32 %v677, 0.55
        %v806 = vadd.f32 %v678, 0.55
        %v807 = vadd.f32 %v679, 0.55
        %v808 = vadd.f32 %v680, 0.55
        %v809 = vadd.f32 %v681, 0.55
        %v810 = vadd.f32 %v682, 0.55
        %v811 = vadd.f32 %v683, 0.55
        %v812 = vadd.f32 %v684, 0.55
        %v813 = vadd.f32 %v685, 0.55
        %v814 = vadd.f32 %v686, 0.55
        %v815 = vadd.f32 %v687, 0.55
        %v816 = vadd.f32 %v688, 0.55
        %817 = vst [vmem:[%s173] sm:$0xff] %v689
        %818 = vst [vmem:[%s173 + $0x8] sm:$0xff] %v690
        %819 = vst [vmem:[%s173 + $0x10] sm:$0xff] %v691
        %820 = vst [vmem:[%s173 + $0x18] sm:$0xff] %v692
        %821 = vst [vmem:[%s173 + $0x20] sm:$0xff] %v693
        %822 = vst [vmem:[%s173 + $0x28] sm:$0xff] %v694
        %823 = vst [vmem:[%s173 + $0x30] sm:$0xff] %v695
        %824 = vst [vmem:[%s173 + $0x38] sm:$0xff] %v696
        %825 = vst [vmem:[%s173 + $0x40] sm:$0xff] %v697
        %826 = vst [vmem:[%s173 + $0x48] sm:$0xff] %v698
        %827 = vst [vmem:[%s173 + $0x50] sm:$0xff] %v699
        %828 = vst [vmem:[%s173 + $0x58] sm:$0xff] %v700
        %829 = vst [vmem:[%s173 + $0x60] sm:$0xff] %v701
        %830 = vst [vmem:[%s173 + $0x68] sm:$0xff] %v702
        %831 = vst [vmem:[%s173 + $0x70] sm:$0xff] %v703
        %832 = vst [vmem:[%s173 + $0x78] sm:$0xff] %v704
        %833 = vst [vmem:[%s173 + $0x80] sm:$0xff] %v705
        %834 = vst [vmem:[%s173 + $0x88] sm:$0xff] %v706
        %835 = vst [vmem:[%s173 + $0x90] sm:$0xff] %v707
        %836 = vst [vmem:[%s173 + $0x98] sm:$0xff] %v708
        %837 = vst [vmem:[%s173 + $0xa0] sm:$0xff] %v709
        %838 = vst [vmem:[%s173 + $0xa8] sm:$0xff] %v710
        %839 = vst [vmem:[%s173 + $0xb0] sm:$0xff] %v711
        %840 = vst [vmem:[%s173 + $0xb8] sm:$0xff] %v712
        %841 = vst [vmem:[%s173 + $0xc0] sm:$0xff] %v713
        %842 = vst [vmem:[%s173 + $0xc8] sm:$0xff] %v714
        %843 = vst [vmem:[%s173 + $0xd0] sm:$0xff] %v715
        %844 = vst [vmem:[%s173 + $0xd8] sm:$0xff] %v716
        %845 = vst [vmem:[%s173 + $0xe0] sm:$0xff] %v717
        %846 = vst [vmem:[%s173 + $0xe8] sm:$0xff] %v718
        %847 = vst [vmem:[%s173 + $0xf0] sm:$0xff] %v719
        %848 = vst [vmem:[%s173 + $0xf8] sm:$0xff] %v720
        %849 = vst [vmem:[%s173 + $0x100] sm:$0xff] %v721
        %850 = vst [vmem:[%s173 + $0x108] sm:$0xff] %v722
        %851 = vst [vmem:[%s173 + $0x110] sm:$0xff] %v723
        %852 = vst [vmem:[%s173 + $0x118] sm:$0xff] %v724
        %853 = vst [vmem:[%s173 + $0x120] sm:$0xff] %v725
        %854 = vst [vmem:[%s173 + $0x128] sm:$0xff] %v726
        %855 = vst [vmem:[%s173 + $0x130] sm:$0xff] %v727
        %856 = vst [vmem:[%s173 + $0x138] sm:$0xff] %v728
        %857 = vst [vmem:[%s173 + $0x140] sm:$0xff] %v729
        %858 = vst [vmem:[%s173 + $0x148] sm:$0xff] %v730
        %859 = vst [vmem:[%s173 + $0x150] sm:$0xff] %v731
        %860 = vst [vmem:[%s173 + $0x158] sm:$0xff] %v732
        %861 = vst [vmem:[%s173 + $0x160] sm:$0xff] %v733
        %862 = vst [vmem:[%s173 + $0x168] sm:$0xff] %v734
        %863 = vst [vmem:[%s173 + $0x170] sm:$0xff] %v735
        %864 = vst [vmem:[%s173 + $0x178] sm:$0xff] %v736
        %865 = vst [vmem:[%s173 + $0x180] sm:$0xff] %v737
        %866 = vst [vmem:[%s173 + $0x188] sm:$0xff] %v738
        %867 = vst [vmem:[%s173 + $0x190] sm:$0xff] %v739
        %868 = vst [vmem:[%s173 + $0x198] sm:$0xff] %v740
        %869 = vst [vmem:[%s173 + $0x1a0] sm:$0xff] %v741
        %870 = vst [vmem:[%s173 + $0x1a8] sm:$0xff] %v742
        %871 = vst [vmem:[%s173 + $0x1b0] sm:$0xff] %v743
        %872 = vst [vmem:[%s173 + $0x1b8] sm:$0xff] %v744
        %873 = vst [vmem:[%s173 + $0x1c0] sm:$0xff] %v745
        %874 = vst [vmem:[%s173 + $0x1c8] sm:$0xff] %v746
        %875 = vst [vmem:[%s173 + $0x1d0] sm:$0xff] %v747
        %876 = vst [vmem:[%s173 + $0x1d8] sm:$0xff] %v748
        %877 = vst [vmem:[%s173 + $0x1e0] sm:$0xff] %v749
        %878 = vst [vmem:[%s173 + $0x1e8] sm:$0xff] %v750
        %879 = vst [vmem:[%s173 + $0x1f0] sm:$0xff] %v751
        %880 = vst [vmem:[%s173 + $0x1f8] sm:$0xff] %v752
        %881 = vst [vmem:[%s173 + $0x200] sm:$0xff] %v753
        %882 = vst [vmem:[%s173 + $0x208] sm:$0xff] %v754
        %883 = vst [vmem:[%s173 + $0x210] sm:$0xff] %v755
        %884 = vst [vmem:[%s173 + $0x218] sm:$0xff] %v756
        %885 = vst [vmem:[%s173 + $0x220] sm:$0xff] %v757
        %886 = vst [vmem:[%s173 + $0x228] sm:$0xff] %v758
        %887 = vst [vmem:[%s173 + $0x230] sm:$0xff] %v759
        %888 = vst [vmem:[%s173 + $0x238] sm:$0xff] %v760
        %889 = vst [vmem:[%s173 + $0x240] sm:$0xff] %v761
        %890 = vst [vmem:[%s173 + $0x248] sm:$0xff] %v762
        %891 = vst [vmem:[%s173 + $0x250] sm:$0xff] %v763
        %892 = vst [vmem:[%s173 + $0x258] sm:$0xff] %v764
        %893 = vst [vmem:[%s173 + $0x260] sm:$0xff] %v765
        %894 = vst [vmem:[%s173 + $0x268] sm:$0xff] %v766
        %895 = vst [vmem:[%s173 + $0x270] sm:$0xff] %v767
        %896 = vst [vmem:[%s173 + $0x278] sm:$0xff] %v768
        %897 = vst [vmem:[%s173 + $0x280] sm:$0xff] %v769
        %898 = vst [vmem:[%s173 + $0x288] sm:$0xff] %v770
        %899 = vst [vmem:[%s173 + $0x290] sm:$0xff] %v771
        %900 = vst [vmem:[%s173 + $0x298] sm:$0xff] %v772
        %901 = vst [vmem:[%s173 + $0x2a0] sm:$0xff] %v773
        %902 = vst [vmem:[%s173 + $0x2a8] sm:$0xff] %v774
        %903 = vst [vmem:[%s173 + $0x2b0] sm:$0xff] %v775
        %904 = vst [vmem:[%s173 + $0x2b8] sm:$0xff] %v776
        %905 = vst [vmem:[%s173 + $0x2c0] sm:$0xff] %v777
        %906 = vst [vmem:[%s173 + $0x2c8] sm:$0xff] %v778
        %907 = vst [vmem:[%s173 + $0x2d0] sm:$0xff] %v779
        %908 = vst [vmem:[%s173 + $0x2d8] sm:$0xff] %v780
        %909 = vst [vmem:[%s173 + $0x2e0] sm:$0xff] %v781
        %910 = vst [vmem:[%s173 + $0x2e8] sm:$0xff] %v782
        %911 = vst [vmem:[%s173 + $0x2f0] sm:$0xff] %v783
        %912 = vst [vmem:[%s173 + $0x2f8] sm:$0xff] %v784
        %913 = vst [vmem:[%s173 + $0x300] sm:$0xff] %v785
        %914 = vst [vmem:[%s173 + $0x308] sm:$0xff] %v786
        %915 = vst [vmem:[%s173 + $0x310] sm:$0xff] %v787
        %916 = vst [vmem:[%s173 + $0x318] sm:$0xff] %v788
        %917 = vst [vmem:[%s173 + $0x320] sm:$0xff] %v789
        %918 = vst [vmem:[%s173 + $0x328] sm:$0xff] %v790
        %919 = vst [vmem:[%s173 + $0x330] sm:$0xff] %v791
        %920 = vst [vmem:[%s173 + $0x338] sm:$0xff] %v792
        %921 = vst [vmem:[%s173 + $0x340] sm:$0xff] %v793
        %922 = vst [vmem:[%s173 + $0x348] sm:$0xff] %v794
        %923 = vst [vmem:[%s173 + $0x350] sm:$0xff] %v795
        %924 = vst [vmem:[%s173 + $0x358] sm:$0xff] %v796
        %925 = vst [vmem:[%s173 + $0x360] sm:$0xff] %v797
        %926 = vst [vmem:[%s173 + $0x368] sm:$0xff] %v798
        %927 = vst [vmem:[%s173 + $0x370] sm:$0xff] %v799
        %928 = vst [vmem:[%s173 + $0x378] sm:$0xff] %v800
        %929 = vst [vmem:[%s173 + $0x380] sm:$0xff] %v801
        %930 = vst [vmem:[%s173 + $0x388] sm:$0xff] %v802
        %931 = vst [vmem:[%s173 + $0x390] sm:$0xff] %v803
        %932 = vst [vmem:[%s173 + $0x398] sm:$0xff] %v804
        %933 = vst [vmem:[%s173 + $0x3a0] sm:$0xff] %v805
        %934 = vst [vmem:[%s173 + $0x3a8] sm:$0xff] %v806
        %935 = vst [vmem:[%s173 + $0x3b0] sm:$0xff] %v807
        %936 = vst [vmem:[%s173 + $0x3b8] sm:$0xff] %v808
        %937 = vst [vmem:[%s173 + $0x3c0] sm:$0xff] %v809
        %938 = vst [vmem:[%s173 + $0x3c8] sm:$0xff] %v810
        %939 = vst [vmem:[%s173 + $0x3d0] sm:$0xff] %v811
        %940 = vst [vmem:[%s173 + $0x3d8] sm:$0xff] %v812
        %941 = vst [vmem:[%s173 + $0x3e0] sm:$0xff] %v813
        %942 = vst [vmem:[%s173 + $0x3e8] sm:$0xff] %v814
        %943 = vst [vmem:[%s173 + $0x3f0] sm:$0xff] %v815
        %944 = vst [vmem:[%s173 + $0x3f8] sm:$0xff] %v816
        %s945 = sand.u32 %s57, 1
        %s946 = scalar_lea.sflag [#allocation4], %s945
        %s947 = sand.u32 %s57, 1
        %s948 = smul.addr %s947, 1024
        %s949 = scalar_lea.vmem [#allocation5], %s948
        %s950 = sand.u32 %s83, 1
        %s951 = scalar_lea.sflag [#allocation7], %s950
        %s952 = sand.u32 %s83, 1
        %s953 = smul.addr %s952, 1024
        %s954 = scalar_lea.vmem [#allocation6], %s953
        // Predicated region
        $region29: #{tpu_custom_call.1} parent=23 // pred_check
          %p955 = pneg %p67
        $region30: #{tpu_custom_call.1} parent=23 // pred_check_branch
          %957 = sbr.rel (%p955) target = $region32
        $region31: #{tpu_custom_call.1} parent=23 // pred_region
          %s958 = smul.u32 128, %s23
          %s960 = ssub.s32 16384, 16384
          %961 = vsyncadd %s946, %s960
          %s962 = smul.addr %s958, 128
          %s963 = scalar_lea.hbm %s1, %s962
          %s964 = sshll.u32 %s949, 4
          %s965 = int_to_ptr.vmem [resolvable:$true] %s964
          %970 = dma.vmem_to_hbm [thread:$0]  %s965, 16384, %s963, %s946, 128, 128, 8
        $region32: #{tpu_custom_call.1} parent=23 // pred_fallthru
          _
        // Predicated region
        $region33: #{tpu_custom_call.1} parent=23 // pred_check
          %p971 = pneg %p93
        $region34: #{tpu_custom_call.1} parent=23 // pred_check_branch
          %973 = sbr.rel (%p971) target = $region36
        $region35: #{tpu_custom_call.1} parent=23 // pred_region
          %s974 = smul.u32 128, %s23
          %s976 = ssub.s32 16384, 16384
          %977 = vsyncadd %s951, %s976
          %s978 = smul.addr %s974, 128
          %s979 = scalar_lea.hbm %s2, %s978
          %s980 = sshll.u32 %s954, 4
          %s981 = int_to_ptr.vmem [resolvable:$true] %s980
          %986 = dma.vmem_to_hbm [thread:$0]  %s981, 16384, %s979, %s951, 128, 128, 8
        $region36: #{tpu_custom_call.1} parent=23 // pred_fallthru
          _
      $region24: #{tpu_custom_call.1} parent=5 // pred_fallthru
        _
      %p987 = scmp.le.s32.totalorder 2, %s18
      // Predicated region
      $region37: #{tpu_custom_call.1} parent=5 // pred_check
        %p988 = pneg %p987
      $region38: #{tpu_custom_call.1} parent=5 // pred_check_branch
        %990 = sbr.rel (%p988) target = $region40
      $region39: #{tpu_custom_call.1} parent=5 // pred_region
        %s991 = ssub.s32 %s18, 2
        // Predicated region
        $region41: #{tpu_custom_call.1} parent=39 // pred_check
          %p992 = pneg %p73
        $region42: #{tpu_custom_call.1} parent=39 // pred_check_branch
          %994 = sbr.rel (%p992) target = $region44
        $region43: #{tpu_custom_call.1} parent=39 // pred_region
          %s995 = sand.u32 %s58, 1
          %s996 = scalar_lea.sflag [#allocation4], %s995
          %s997 = sand.u32 %s58, 1
          %s998 = smul.addr %s997, 1024
          %s999 = scalar_lea.vmem [#allocation5], %s998
          %1000 = dma.done %s996, 16384
        $region44: #{tpu_custom_call.1} parent=39 // pred_fallthru
          _
        // Predicated region
        $region45: #{tpu_custom_call.1} parent=39 // pred_check
          %p1001 = pneg %p99
        $region46: #{tpu_custom_call.1} parent=39 // pred_check_branch
          %1003 = sbr.rel (%p1001) target = $region48
        $region47: #{tpu_custom_call.1} parent=39 // pred_region
          %s1004 = sand.u32 %s84, 1
          %s1005 = scalar_lea.sflag [#allocation7], %s1004
          %s1006 = sand.u32 %s84, 1
          %s1007 = smul.addr %s1006, 1024
          %s1008 = scalar_lea.vmem [#allocation6], %s1007
          %1009 = dma.done %s1005, 16384
        $region48: #{tpu_custom_call.1} parent=39 // pred_fallthru
          _
      $region40: #{tpu_custom_call.1} parent=5 // pred_fallthru
        _
    $region6: #{tpu_custom_call.1} parent=1 // loop_footer
      %s22 = sadd.s32 1, %s18
    $region7: #{tpu_custom_call.1} parent=1 // loop_footer_branch
      %17 = sbr.rel target = $region3
    $region8: #{tpu_custom_call.1} parent=1 // loop_exit
      _
    %1010 = vsyncpa [#allocation3], 1
    %s1011 = scalar_lea.sflag [#allocation3], 1
    %1012 = vsyncpa %s1011, 1
    %1013 = vsyncpa [#allocation4], 1
    %s1014 = scalar_lea.sflag [#allocation4], 1
    %1015 = vsyncpa %s1014, 1
    %1016 = vsyncpa [#allocation7], 1
    %s1017 = scalar_lea.sflag [#allocation7], 1
    %1018 = vsyncpa %s1017, 1

</llo_original>
